<compile_context>
chip_gen: v6e
topology: v6e:2x2x1
jax: 0.10.0
libtpu: 0.0.40
codegen_flags: <defaults>
</compile_context>

<pallas_src>
import jax
import jax.numpy as jnp
from jax import lax
from jax.experimental import pallas as pl
from jax.experimental.pallas import tpu as pltpu

EPS = 1e-5


# --------------------------------------------------------------------------- #
# Kernel
# --------------------------------------------------------------------------- #
def _make_kernel(N, H, W, Cin, Cout):
    R = N * H                       # sublane rows of the lane-dense view
    WCi, WCo = W * Cin, W * Cout
    bf16 = jnp.bfloat16

    def kernel(x_ref, a1_ref, a2_ref, w1_ref, w2cat_ref, wb_ref, vec_ref, o_ref):
        x2d = x_ref[...]                                    # (R, WCi) f32 lane-dense

        # Image-local row index and the two vertical-tap validity masks
        # (hoisted once; reused by both convs).
        h_idx = lax.broadcasted_iota(jnp.int32, (R, 1), 0) % H
        mask_up = h_idx >= 1          # rows with a valid h-1 neighbor
        mask_dn = h_idx < H - 1       # rows with a valid h+1 neighbor

        def taps(h):
            # dy=0 needs input row h-1 -> roll rows down by 1, mask h == 0
            up = jnp.where(mask_up, pltpu.roll(h, 1, 0), 0.0)
            # dy=2 needs input row h+1 -> roll rows up by 1, mask h == H-1
            dn = jnp.where(mask_dn, pltpu.roll(h, R - 1, 0), 0.0)
            return up, dn

        def batchnorm_relu(h, a, g, b):
            # Per-channel batch stats, two-pass, entirely lane-dense and in f32:
            # sublane mean -> (1, W*C); @A groups over W and broadcasts back.
            m = jnp.dot(jnp.mean(h, axis=0, keepdims=True), a,
                        preferred_element_type=jnp.float32)
            d = h - m
            v = jnp.dot(jnp.mean(d * d, axis=0, keepdims=True), a,
                        preferred_element_type=jnp.float32)
            return jnp.maximum(d * (g * lax.rsqrt(v + EPS)) + b, 0.0)

        # ---- BN1 + ReLU + conv1 (3 bf16 MXU matmuls, one per vertical tap) ----
        g1 = vec_ref[0:1, 0:WCi]
        b1 = vec_ref[1:2, 0:WCi]
        h1 = batchnorm_relu(x2d, a1_ref[...], g1, b1)       # f32
        up1, dn1 = taps(h1)
        c1 = jnp.dot(h1.astype(bf16), w1_ref[1], preferred_element_type=jnp.float32)
        c1 = c1 + jnp.dot(up1.astype(bf16), w1_ref[0],
                          preferred_element_type=jnp.float32)
        c1 = c1 + jnp.dot(dn1.astype(bf16), w1_ref[2],
                          preferred_element_type=jnp.float32)
        # conv1 bias omitted: a per-channel constant added right before BN2's
        # mean subtraction cancels exactly (training-mode BN).

        # ---- BN2 + ReLU + conv2 (single K-concatenated bf16 matmul, K=3*WCo) ----
        g2 = vec_ref[2:3, 0:WCo]
        b2 = vec_ref[3:4, 0:WCo]
        h2 = batchnorm_relu(c1, a2_ref[...], g2, b2)        # f32
        up2, dn2 = taps(h2)
        cat = jnp.concatenate([up2, h2, dn2], axis=-1).astype(bf16)   # (R, 3*WCo)
        out = jnp.dot(cat, w2cat_ref[...], preferred_element_type=jnp.float32)

        # ---- 1x1 bypass + fused (conv2 + bypass) bias ----
        out = out + jnp.dot(x2d.astype(bf16), wb_ref[...],
                            preferred_element_type=jnp.float32)
        o_ref[...] = out + vec_ref[4:5, 0:WCo]

    return kernel


# --------------------------------------------------------------------------- #
# One-time weight expansion (per parameter update, NOT per forward call)
# --------------------------------------------------------------------------- #
def _banded_conv_weight(w, Wd):
    """HWIO (3,3,Ci,Co) -> (3, Wd*Ci, Wd*Co): one banded matrix per vertical tap.

    M[dy][wi*Ci + c, wo*Co + o] = w[dy, wi-wo+1, c, o] (zero outside the band),
    so a SAME 3x3 conv becomes sum_dy rowshift_dy(x2d) @ M[dy] on the lane-dense
    (N*H, W*C) view; horizontal zero padding == the zero band.
    """
    mats = []
    for dy in range(3):
        m = sum(jnp.kron(jnp.eye(Wd, k=1 - dx, dtype=w.dtype), w[dy, dx])
                for dx in range(3))
        mats.append(m)
    return jnp.stack(mats)


def prepare_params(params, W):
    """Expand raw module parameters into the kernel's resident-weight layout.

    Call ONCE per parameter update; the result is reused by every forward.
    Conv / bypass weights are stored bf16 (native MXU dtype); BN stat matrices
    and the per-lane vector slab stay f32.
    """
    f32, bf16 = jnp.float32, jnp.bfloat16
    Cin, Cout = params["w1"].shape[2], params["w1"].shape[3]

    w1 = _banded_conv_weight(params["w1"], W).astype(bf16)          # (3, W*Cin, W*Cout)
    w2 = _banded_conv_weight(params["w2"], W)                       # (3, W*Cout, W*Cout)
    w2cat = w2.reshape(3 * W * Cout, W * Cout).astype(bf16)         # K-concat order dy=0,1,2
    wb = jnp.kron(jnp.eye(W, dtype=f32), params["wb"]).astype(bf16)  # (W*Cin, W*Cout)

    # Group-over-W + broadcast-back matrices for per-channel BN stats (f32).
    a1 = jnp.kron(jnp.ones((W, W), f32) / W, jnp.eye(Cin, dtype=f32))
    a2 = jnp.kron(jnp.ones((W, W), f32) / W, jnp.eye(Cout, dtype=f32))

    # Packed per-lane vector slab: rows = [g1, b1, g2, b2, fused bias] (one DMA).
    LN = max(W * Cin, W * Cout)
    lane = lambda p: jnp.tile(p, W)
    slab = jnp.zeros((8, LN), f32)
    slab = slab.at[0, :W * Cin].set(lane(params["g1"]))
    slab = slab.at[1, :W * Cin].set(lane(params["b1"]))
    slab = slab.at[2, :W * Cout].set(lane(params["g2"]))
    slab = slab.at[3, :W * Cout].set(lane(params["b2"]))
    slab = slab.at[4, :W * Cout].set(lane(params["cb2"] + params["bb"]))

    return dict(w1=w1, w2cat=w2cat, wb=wb, a1=a1, a2=a2, vec=slab)


# --------------------------------------------------------------------------- #
# Forward
# --------------------------------------------------------------------------- #
@jax.jit
def resblock_generator(x, prep):
    """x: (N, H, W, Cin) float32 NHWC (== PyTorch NCHW [N, Cin, H, W])."""
    N, H, W, Cin = x.shape
    Cout = prep["wb"].shape[-1] // W
    R = N * H
    f32 = jnp.float32

    x2d = x.reshape(R, W * Cin)                              # free row-major reshape
    args = (x2d, prep["a1"], prep["a2"], prep["w1"], prep["w2cat"],
            prep["wb"], prep["vec"])

    # Real VMEM accounting (inputs + output + headroom), capped below v7x's
    # 64 MiB physical VMEM.
    total = sum(int(a.size) * a.dtype.itemsize for a in args) + R * W * Cout * 4
    vmem_limit = int(min(48 << 20, max(4 << 20, 3 * total)))

    vmem = pl.BlockSpec(memory_space=pltpu.MemorySpace.VMEM)
    out2d = pl.pallas_call(
        _make_kernel(N, H, W, Cin, Cout),
        out_shape=jax.ShapeDtypeStruct((R, W * Cout), f32),
        in_specs=[vmem] * len(args),
        out_specs=vmem,
        compiler_params=pltpu.CompilerParams(vmem_limit_bytes=vmem_limit),
    )(*args)
    return out2d.reshape(N, H, W, Cout)                      # free row-major reshape


# --------------------------------------------------------------------------- #
# Pure-JAX reference (same semantics as the PyTorch module, NHWC, f32)
# --------------------------------------------------------------------------- #
def ref_forward(x, params):
    def bn(h, g, b):
        m = jnp.mean(h, axis=(0, 1, 2), keepdims=True)
        v = jnp.mean((h - m) ** 2, axis=(0, 1, 2), keepdims=True)
        return (h - m) / jnp.sqrt(v + EPS) * g + b

    dn = ('NHWC', 'HWIO', 'NHWC')
    h = jax.nn.relu(bn(x, params["g1"], params["b1"]))
    h = lax.conv_general_dilated(h, params["w1"], (1, 1), 'SAME',
                                 dimension_numbers=dn) + params["cb1"]
    h = jax.nn.relu(bn(h, params["g2"], params["b2"]))
    h = lax.conv_general_dilated(h, params["w2"], (1, 1), 'SAME',
                                 dimension_numbers=dn) + params["cb2"]
    byp = jnp.einsum('nhwc,co->nhwo', x, params["wb"]) + params["bb"]
    return h + byp


if __name__ == "__main__":
    key = jax.random.PRNGKey(0)
    ks = jax.random.split(key, 11)

    # PyTorch x would be NCHW [2, 4, 16, 16]; kernel uses NHWC [2, 16, 16, 4].
    N, H, W = 2, 16, 16
    Cin, Cout = 4, 8            # in_ch != out_ch -> bypass is a 1x1 conv

    x = jax.random.normal(ks[0], (N, H, W, Cin), jnp.float32)
    params = dict(
        g1=1.0 + 0.1 * jax.random.normal(ks[1], (Cin,), jnp.float32),
        b1=0.1 * jax.random.normal(ks[2], (Cin,), jnp.float32),
        w1=0.1 * jax.random.normal(ks[3], (3, 3, Cin, Cout), jnp.float32),
        cb1=0.1 * jax.random.normal(ks[4], (Cout,), jnp.float32),
        g2=1.0 + 0.1 * jax.random.normal(ks[5], (Cout,), jnp.float32),
        b2=0.1 * jax.random.normal(ks[6], (Cout,), jnp.float32),
        w2=0.1 * jax.random.normal(ks[7], (3, 3, Cout, Cout), jnp.float32),
        cb2=0.1 * jax.random.normal(ks[8], (Cout,), jnp.float32),
        wb=0.1 * jax.random.normal(ks[9], (Cin, Cout), jnp.float32),
        bb=0.1 * jax.random.normal(ks[10], (Cout,), jnp.float32),
    )

    # Weight expansion happens ONCE here, not inside the per-call forward.
    prepared = jax.tree_util.tree_map(jax.block_until_ready,
                                      prepare_params(params, W))

    out = jax.block_until_ready(resblock_generator(x, prepared))
    ref = jax.block_until_ready(ref_forward(x, params))

    assert out.shape == (N, H, W, Cout), out.shape
    # Tolerance reflects bf16 MXU operands (f32 accumulation) vs the f32 reference.
    err = float(jnp.max(jnp.abs(out - ref)))
    assert jnp.allclose(out, ref, atol=2e-2, rtol=2e-2), f"max abs err={err}"
    print("KERNEL_OK")
</pallas_src>

<mosaic_0001>
module attributes {stable_mosaic.version = 11 : i64} {
  func.func @kernel(%arg0: memref<32x64xf32, #tpu.memory_space<vmem>>, %arg1: memref<64x64xf32, #tpu.memory_space<vmem>>, %arg2: memref<128x128xf32, #tpu.memory_space<vmem>>, %arg3: memref<3x64x128xbf16, #tpu.memory_space<vmem>>, %arg4: memref<384x128xbf16, #tpu.memory_space<vmem>>, %arg5: memref<64x128xbf16, #tpu.memory_space<vmem>>, %arg6: memref<8x128xf32, #tpu.memory_space<vmem>>, %arg7: memref<32x128xf32, #tpu.memory_space<vmem>>) attributes {dimension_semantics = [], scalar_prefetch = 0 : i64, scratch_operands = 0 : i64, tpu.core_type = #tpu.core_type<tc>} {
    %c0 = arith.constant 0 : index
    %c0_0 = arith.constant 0 : index
    %0 = vector.load %arg0[%c0, %c0_0] : memref<32x64xf32, #tpu.memory_space<vmem>>, vector<32x64xf32>
    %1 = tpu.iota {dimensions = array<i32: 0>} : vector<32x1xi32>
    %c16_i32 = arith.constant 16 : i32
    %c0_i32 = arith.constant 0 : i32
    %2 = arith.cmpi eq, %c16_i32, %c0_i32 : i32
    %c1_i32 = arith.constant 1 : i32
    %3 = arith.select %2, %c1_i32, %c16_i32 : i32
    %4 = vector.broadcast %3 : i32 to vector<32x1xi32>
    %5 = arith.remsi %1, %4 : vector<32x1xi32>
    %c0_i32_1 = arith.constant 0 : i32
    %6 = vector.broadcast %c0_i32_1 : i32 to vector<32x1xi32>
    %7 = arith.cmpi ne, %5, %6 : vector<32x1xi32>
    %c0_i32_2 = arith.constant 0 : i32
    %8 = vector.broadcast %c0_i32_2 : i32 to vector<32x1xi32>
    %9 = arith.cmpi slt, %5, %8 : vector<32x1xi32>
    %c0_i32_3 = arith.constant 0 : i32
    %10 = arith.cmpi slt, %3, %c0_i32_3 : i32
    %11 = vector.broadcast %10 : i1 to vector<32x1xi1>
    %12 = vector.broadcast %11 : vector<32x1xi1> to vector<32x1xi1>
    %13 = arith.xori %9, %12 : vector<32x1xi1>
    %14 = arith.andi %13, %7 : vector<32x1xi1>
    %15 = vector.broadcast %3 : i32 to vector<32x1xi32>
    %16 = arith.addi %5, %15 : vector<32x1xi32>
    %17 = arith.select %14, %16, %5 : vector<32x1xi1>, vector<32x1xi32>
    %c1_i32_4 = arith.constant 1 : i32
    %18 = vector.broadcast %c1_i32_4 : i32 to vector<32x1xi32>
    %19 = arith.cmpi sge, %17, %18 : vector<32x1xi32>
    %c15_i32 = arith.constant 15 : i32
    %20 = vector.broadcast %c15_i32 : i32 to vector<32x1xi32>
    %21 = arith.cmpi slt, %17, %20 : vector<32x1xi32>
    %c0_5 = arith.constant 0 : index
    %c0_6 = arith.constant 0 : index
    %22 = vector.load %arg6[%c0_5, %c0_6] : memref<8x128xf32, #tpu.memory_space<vmem>>, vector<1x64xf32>
    %c1 = arith.constant 1 : index
    %c0_7 = arith.constant 0 : index
    %23 = vector.load %arg6[%c1, %c0_7] : memref<8x128xf32, #tpu.memory_space<vmem>>, vector<1x64xf32>
    %c0_8 = arith.constant 0 : index
    %c0_9 = arith.constant 0 : index
    %24 = vector.load %arg1[%c0_8, %c0_9] : memref<64x64xf32, #tpu.memory_space<vmem>>, vector<64x64xf32>
    %cst = arith.constant dense<0.000000e+00> : vector<64xf32>
    %25 = vector.multi_reduction <add>, %0, %cst [0] : vector<32x64xf32> to vector<64xf32>
    %26 = vector.shape_cast %25 : vector<64xf32> to vector<1x64xf32>
    %cst_10 = arith.constant 3.200000e+01 : f32
    %27 = vector.broadcast %cst_10 : f32 to vector<1x64xf32>
    %28 = arith.divf %26, %27 : vector<1x64xf32>
    %cst_11 = arith.constant dense<0.000000e+00> : vector<1x64xf32>
    %29 = tpu.matmul %28, %24, %cst_11 {dimension_numbers = #tpu.dot_dimension_numbers<[1], [0], [0], [1], [0, 0, 1, 1], [], []>} : vector<1x64xf32>, vector<64x64xf32>, vector<1x64xf32> -> vector<1x64xf32>
    %30 = vector.broadcast %29 : vector<1x64xf32> to vector<32x64xf32>
    %31 = arith.subf %0, %30 : vector<32x64xf32>
    %32 = arith.mulf %31, %31 : vector<32x64xf32>
    %cst_12 = arith.constant dense<0.000000e+00> : vector<64xf32>
    %33 = vector.multi_reduction <add>, %32, %cst_12 [0] : vector<32x64xf32> to vector<64xf32>
    %34 = vector.shape_cast %33 : vector<64xf32> to vector<1x64xf32>
    %cst_13 = arith.constant 3.200000e+01 : f32
    %35 = vector.broadcast %cst_13 : f32 to vector<1x64xf32>
    %36 = arith.divf %34, %35 : vector<1x64xf32>
    %cst_14 = arith.constant dense<0.000000e+00> : vector<1x64xf32>
    %37 = tpu.matmul %36, %24, %cst_14 {dimension_numbers = #tpu.dot_dimension_numbers<[1], [0], [0], [1], [0, 0, 1, 1], [], []>} : vector<1x64xf32>, vector<64x64xf32>, vector<1x64xf32> -> vector<1x64xf32>
    %cst_15 = arith.constant 9.99999974E-6 : f32
    %38 = vector.broadcast %cst_15 : f32 to vector<1x64xf32>
    %39 = arith.addf %37, %38 : vector<1x64xf32>
    %40 = math.rsqrt %39 : vector<1x64xf32>
    %41 = arith.mulf %22, %40 : vector<1x64xf32>
    %42 = vector.broadcast %41 : vector<1x64xf32> to vector<32x64xf32>
    %43 = arith.mulf %31, %42 : vector<32x64xf32>
    %44 = vector.broadcast %23 : vector<1x64xf32> to vector<32x64xf32>
    %45 = arith.addf %43, %44 : vector<32x64xf32>
    %cst_16 = arith.constant 0.000000e+00 : f32
    %46 = vector.broadcast %cst_16 : f32 to vector<32x64xf32>
    %47 = arith.maximumf %45, %46 : vector<32x64xf32>
    %c1_i32_17 = arith.constant 1 : i32
    %48 = tpu.dynamic_rotate %47 by %c1_i32_17 dim 0 : vector<32x64xf32>, i32 -> vector<32x64xf32>
    %cst_18 = arith.constant 0.000000e+00 : f32
    %49 = vector.shape_cast %19 : vector<32x1xi1> to vector<32x1xi1>
    %50 = vector.broadcast %49 : vector<32x1xi1> to vector<32x64xi1>
    %51 = vector.broadcast %cst_18 : f32 to vector<32x64xf32>
    %52 = arith.select %50, %48, %51 : vector<32x64xi1>, vector<32x64xf32>
    %c31_i32 = arith.constant 31 : i32
    %53 = tpu.dynamic_rotate %47 by %c31_i32 dim 0 : vector<32x64xf32>, i32 -> vector<32x64xf32>
    %cst_19 = arith.constant 0.000000e+00 : f32
    %54 = vector.shape_cast %21 : vector<32x1xi1> to vector<32x1xi1>
    %55 = vector.broadcast %54 : vector<32x1xi1> to vector<32x64xi1>
    %56 = vector.broadcast %cst_19 : f32 to vector<32x64xf32>
    %57 = arith.select %55, %53, %56 : vector<32x64xi1>, vector<32x64xf32>
    %58 = arith.truncf %47 : vector<32x64xf32> to vector<32x64xbf16>
    %c1_20 = arith.constant 1 : index
    %c0_21 = arith.constant 0 : index
    %c0_22 = arith.constant 0 : index
    %59 = vector.load %arg3[%c1_20, %c0_21, %c0_22] : memref<3x64x128xbf16, #tpu.memory_space<vmem>>, vector<1x64x128xbf16>
    %60 = vector.shape_cast %59 : vector<1x64x128xbf16> to vector<64x128xbf16>
    %cst_23 = arith.constant dense<0.000000e+00> : vector<32x128xf32>
    %61 = tpu.matmul %58, %60, %cst_23 {dimension_numbers = #tpu.dot_dimension_numbers<[1], [0], [0], [1], [0, 0, 1, 1], [], []>} : vector<32x64xbf16>, vector<64x128xbf16>, vector<32x128xf32> -> vector<32x128xf32>
    %62 = arith.truncf %52 : vector<32x64xf32> to vector<32x64xbf16>
    %c0_24 = arith.constant 0 : index
    %c0_25 = arith.constant 0 : index
    %c0_26 = arith.constant 0 : index
    %63 = vector.load %arg3[%c0_24, %c0_25, %c0_26] : memref<3x64x128xbf16, #tpu.memory_space<vmem>>, vector<1x64x128xbf16>
    %64 = vector.shape_cast %63 : vector<1x64x128xbf16> to vector<64x128xbf16>
    %cst_27 = arith.constant dense<0.000000e+00> : vector<32x128xf32>
    %65 = tpu.matmul %62, %64, %cst_27 {dimension_numbers = #tpu.dot_dimension_numbers<[1], [0], [0], [1], [0, 0, 1, 1], [], []>} : vector<32x64xbf16>, vector<64x128xbf16>, vector<32x128xf32> -> vector<32x128xf32>
    %66 = arith.addf %61, %65 : vector<32x128xf32>
    %67 = arith.truncf %57 : vector<32x64xf32> to vector<32x64xbf16>
    %c2 = arith.constant 2 : index
    %c0_28 = arith.constant 0 : index
    %c0_29 = arith.constant 0 : index
    %68 = vector.load %arg3[%c2, %c0_28, %c0_29] : memref<3x64x128xbf16, #tpu.memory_space<vmem>>, vector<1x64x128xbf16>
    %69 = vector.shape_cast %68 : vector<1x64x128xbf16> to vector<64x128xbf16>
    %cst_30 = arith.constant dense<0.000000e+00> : vector<32x128xf32>
    %70 = tpu.matmul %67, %69, %cst_30 {dimension_numbers = #tpu.dot_dimension_numbers<[1], [0], [0], [1], [0, 0, 1, 1], [], []>} : vector<32x64xbf16>, vector<64x128xbf16>, vector<32x128xf32> -> vector<32x128xf32>
    %71 = arith.addf %66, %70 : vector<32x128xf32>
    %c2_31 = arith.constant 2 : index
    %c0_32 = arith.constant 0 : index
    %72 = vector.load %arg6[%c2_31, %c0_32] : memref<8x128xf32, #tpu.memory_space<vmem>>, vector<1x128xf32>
    %c3 = arith.constant 3 : index
    %c0_33 = arith.constant 0 : index
    %73 = vector.load %arg6[%c3, %c0_33] : memref<8x128xf32, #tpu.memory_space<vmem>>, vector<1x128xf32>
    %c0_34 = arith.constant 0 : index
    %c0_35 = arith.constant 0 : index
    %74 = vector.load %arg2[%c0_34, %c0_35] : memref<128x128xf32, #tpu.memory_space<vmem>>, vector<128x128xf32>
    %cst_36 = arith.constant dense<0.000000e+00> : vector<128xf32>
    %75 = vector.multi_reduction <add>, %71, %cst_36 [0] : vector<32x128xf32> to vector<128xf32>
    %76 = vector.shape_cast %75 : vector<128xf32> to vector<1x128xf32>
    %cst_37 = arith.constant 3.200000e+01 : f32
    %77 = vector.broadcast %cst_37 : f32 to vector<1x128xf32>
    %78 = arith.divf %76, %77 : vector<1x128xf32>
    %cst_38 = arith.constant dense<0.000000e+00> : vector<1x128xf32>
    %79 = tpu.matmul %78, %74, %cst_38 {dimension_numbers = #tpu.dot_dimension_numbers<[1], [0], [0], [1], [0, 0, 1, 1], [], []>} : vector<1x128xf32>, vector<128x128xf32>, vector<1x128xf32> -> vector<1x128xf32>
    %80 = vector.broadcast %79 : vector<1x128xf32> to vector<32x128xf32>
    %81 = arith.subf %71, %80 : vector<32x128xf32>
    %82 = arith.mulf %81, %81 : vector<32x128xf32>
    %cst_39 = arith.constant dense<0.000000e+00> : vector<128xf32>
    %83 = vector.multi_reduction <add>, %82, %cst_39 [0] : vector<32x128xf32> to vector<128xf32>
    %84 = vector.shape_cast %83 : vector<128xf32> to vector<1x128xf32>
    %cst_40 = arith.constant 3.200000e+01 : f32
    %85 = vector.broadcast %cst_40 : f32 to vector<1x128xf32>
    %86 = arith.divf %84, %85 : vector<1x128xf32>
    %cst_41 = arith.constant dense<0.000000e+00> : vector<1x128xf32>
    %87 = tpu.matmul %86, %74, %cst_41 {dimension_numbers = #tpu.dot_dimension_numbers<[1], [0], [0], [1], [0, 0, 1, 1], [], []>} : vector<1x128xf32>, vector<128x128xf32>, vector<1x128xf32> -> vector<1x128xf32>
    %cst_42 = arith.constant 9.99999974E-6 : f32
    %88 = vector.broadcast %cst_42 : f32 to vector<1x128xf32>
    %89 = arith.addf %87, %88 : vector<1x128xf32>
    %90 = math.rsqrt %89 : vector<1x128xf32>
    %91 = arith.mulf %72, %90 : vector<1x128xf32>
    %92 = vector.broadcast %91 : vector<1x128xf32> to vector<32x128xf32>
    %93 = arith.mulf %81, %92 : vector<32x128xf32>
    %94 = vector.broadcast %73 : vector<1x128xf32> to vector<32x128xf32>
    %95 = arith.addf %93, %94 : vector<32x128xf32>
    %cst_43 = arith.constant 0.000000e+00 : f32
    %96 = vector.broadcast %cst_43 : f32 to vector<32x128xf32>
    %97 = arith.maximumf %95, %96 : vector<32x128xf32>
    %c1_i32_44 = arith.constant 1 : i32
    %98 = tpu.dynamic_rotate %97 by %c1_i32_44 dim 0 : vector<32x128xf32>, i32 -> vector<32x128xf32>
    %cst_45 = arith.constant 0.000000e+00 : f32
    %99 = vector.shape_cast %19 : vector<32x1xi1> to vector<32x1xi1>
    %100 = vector.broadcast %99 : vector<32x1xi1> to vector<32x128xi1>
    %101 = vector.broadcast %cst_45 : f32 to vector<32x128xf32>
    %102 = arith.select %100, %98, %101 : vector<32x128xi1>, vector<32x128xf32>
    %c31_i32_46 = arith.constant 31 : i32
    %103 = tpu.dynamic_rotate %97 by %c31_i32_46 dim 0 : vector<32x128xf32>, i32 -> vector<32x128xf32>
    %cst_47 = arith.constant 0.000000e+00 : f32
    %104 = vector.shape_cast %21 : vector<32x1xi1> to vector<32x1xi1>
    %105 = vector.broadcast %104 : vector<32x1xi1> to vector<32x128xi1>
    %106 = vector.broadcast %cst_47 : f32 to vector<32x128xf32>
    %107 = arith.select %105, %103, %106 : vector<32x128xi1>, vector<32x128xf32>
    %108 = tpu.concatenate %102, %97, %107 in 1 : vector<32x128xf32>, vector<32x128xf32>, vector<32x128xf32> -> vector<32x384xf32>
    %109 = arith.truncf %108 : vector<32x384xf32> to vector<32x384xbf16>
    %c0_48 = arith.constant 0 : index
    %c0_49 = arith.constant 0 : index
    %110 = vector.load %arg4[%c0_48, %c0_49] : memref<384x128xbf16, #tpu.memory_space<vmem>>, vector<384x128xbf16>
    %cst_50 = arith.constant dense<0.000000e+00> : vector<32x128xf32>
    %111 = tpu.matmul %109, %110, %cst_50 {dimension_numbers = #tpu.dot_dimension_numbers<[1], [0], [0], [1], [0, 0, 1, 1], [], []>} : vector<32x384xbf16>, vector<384x128xbf16>, vector<32x128xf32> -> vector<32x128xf32>
    %112 = arith.truncf %0 : vector<32x64xf32> to vector<32x64xbf16>
    %c0_51 = arith.constant 0 : index
    %c0_52 = arith.constant 0 : index
    %113 = vector.load %arg5[%c0_51, %c0_52] : memref<64x128xbf16, #tpu.memory_space<vmem>>, vector<64x128xbf16>
    %cst_53 = arith.constant dense<0.000000e+00> : vector<32x128xf32>
    %114 = tpu.matmul %112, %113, %cst_53 {dimension_numbers = #tpu.dot_dimension_numbers<[1], [0], [0], [1], [0, 0, 1, 1], [], []>} : vector<32x64xbf16>, vector<64x128xbf16>, vector<32x128xf32> -> vector<32x128xf32>
    %115 = arith.addf %111, %114 : vector<32x128xf32>
    %c4 = arith.constant 4 : index
    %c0_54 = arith.constant 0 : index
    %116 = vector.load %arg6[%c4, %c0_54] : memref<8x128xf32, #tpu.memory_space<vmem>>, vector<1x128xf32>
    %117 = vector.broadcast %116 : vector<1x128xf32> to vector<32x128xf32>
    %118 = arith.addf %115, %117 : vector<32x128xf32>
    %c0_55 = arith.constant 0 : index
    %c0_56 = arith.constant 0 : index
    %119 = vector.load %arg7[%c0_55, %c0_56] : memref<32x128xf32, #tpu.memory_space<vmem>>, vector<32x128xf32>
    tpu.vector_store %arg7[%c0_55, %c0_56], %118 {strides = array<i32>} : memref<32x128xf32, #tpu.memory_space<vmem>>, vector<32x128xf32>,
    return
  }
}

</mosaic_0001>

<llo_original>
// kernel: resblock_generator.1
$region0: #{resblock_generator.1}
  #allocation0 [shape = 'u32[]', space=smem, size = 0x4, offset = 0x4, fixed_abs, tag = 'smem constant byte address 0x4 - core index']
  #allocation1 [shape = 'u32[144,128]{1,0:T(1,128)}', space=vmem, size = 0x12000, scoped, tag = 'internal scratch']
  %s0 = inlined_call_operand.vmem [shape: f32[32,64], index: 0, kind: input, shape index: {}]
  %s1 = inlined_call_operand.vmem [shape: f32[64,64], index: 1, kind: input, shape index: {}]
  %s2 = inlined_call_operand.vmem [shape: f32[128,128], index: 2, kind: input, shape index: {}]
  %s3 = inlined_call_operand.vmem [shape: bf16[3,64,128], index: 3, kind: input, shape index: {}]
  %s4 = inlined_call_operand.vmem [shape: bf16[384,128], index: 4, kind: input, shape index: {}]
  %s5 = inlined_call_operand.vmem [shape: bf16[64,128], index: 5, kind: input, shape index: {}]
  %s6 = inlined_call_operand.vmem [shape: f32[8,128], index: 6, kind: input, shape index: {}]
  %s7 = inlined_call_operand.vmem [shape: f32[32,128], index: 7, kind: output, shape index: {}]
  %s8 = sld [smem:[#allocation0]]
  $region38: #{resblock_generator.1} parent=0
    _
  %s10 = ssub.s32 1, %s8
  %s11 = scalar_select 0, %s10, %s8
  // Predicated region
  $region2: #{resblock_generator.1} parent=0 // pred_check
    _
  $region3: #{resblock_generator.1} parent=0 // pred_check_branch
    %13 = sbr.rel (0) target = $region5
  $region4: #{resblock_generator.1} parent=0 // pred_region
    _
  $region5: #{resblock_generator.1} parent=0 // pred_fallthru
    _
  // Predicated region
  $region6: #{resblock_generator.1} parent=0 // pred_check
    _
  $region7: #{resblock_generator.1} parent=0 // pred_check_branch
    %15 = sbr.rel (0) target = $region9
  $region8: #{resblock_generator.1} parent=0 // pred_region
    _
  $region9: #{resblock_generator.1} parent=0 // pred_fallthru
    _
  // Predicated region
  $region10: #{resblock_generator.1} parent=0 // pred_check
    _
  $region11: #{resblock_generator.1} parent=0 // pred_check_branch
    %17 = sbr.rel (0) target = $region13
  $region12: #{resblock_generator.1} parent=0 // pred_region
    _
  $region13: #{resblock_generator.1} parent=0 // pred_fallthru
    _
  // Predicated region
  $region14: #{resblock_generator.1} parent=0 // pred_check
    _
  $region15: #{resblock_generator.1} parent=0 // pred_check_branch
    %19 = sbr.rel (0) target = $region17
  $region16: #{resblock_generator.1} parent=0 // pred_region
    _
  $region17: #{resblock_generator.1} parent=0 // pred_fallthru
    _
  // Predicated region
  $region18: #{resblock_generator.1} parent=0 // pred_check
    _
  $region19: #{resblock_generator.1} parent=0 // pred_check_branch
    %21 = sbr.rel (0) target = $region21
  $region20: #{resblock_generator.1} parent=0 // pred_region
    _
  $region21: #{resblock_generator.1} parent=0 // pred_fallthru
    _
  // Predicated region
  $region22: #{resblock_generator.1} parent=0 // pred_check
    _
  $region23: #{resblock_generator.1} parent=0 // pred_check_branch
    %23 = sbr.rel (0) target = $region25
  $region24: #{resblock_generator.1} parent=0 // pred_region
    _
  $region25: #{resblock_generator.1} parent=0 // pred_fallthru
    _
  // Predicated region
  $region26: #{resblock_generator.1} parent=0 // pred_check
    _
  $region27: #{resblock_generator.1} parent=0 // pred_check_branch
    %25 = sbr.rel (0) target = $region29
  $region28: #{resblock_generator.1} parent=0 // pred_region
    _
  $region29: #{resblock_generator.1} parent=0 // pred_fallthru
    _
  %v27 = vld [vmem:[%s0] sm:$0xff]
  %v28 = vld [vmem:[%s0 + $0x8] sm:$0xff]
  %v29 = vld [vmem:[%s0 + $0x10] sm:$0xff]
  %v30 = vld [vmem:[%s0 + $0x18] sm:$0xff]
  %v31 = vlaneseq
  %v32 = vshrl.u32 %v31, 7
  %v33 = vadd.s32 %v32, 8
  %v34 = vadd.s32 %v32, 16
  %v35 = vadd.s32 %v32, 24
  %vm36 = vcmp.lt.s32.totalorder %v32, 0
  %v37 = vsub.s32 0, %v32
  %v38 = vsel %vm36, %v37, %v32
  %v39 = vshrl.u32 %v38, 4
  %v40 = vand.u32 %v38, 15
  %v41 = vsub.s32 0, %v40
  %v42 = vsel %vm36, %v41, %v40
  %vm43 = vcmp.lt.s32.totalorder %v33, 0
  %v44 = vsub.s32 0, %v33
  %v45 = vsel %vm43, %v44, %v33
  %v46 = vshrl.u32 %v45, 4
  %v47 = vand.u32 %v45, 15
  %v48 = vsub.s32 0, %v47
  %v49 = vsel %vm43, %v48, %v47
  %vm50 = vcmp.lt.s32.totalorder %v34, 0
  %v51 = vsub.s32 0, %v34
  %v52 = vsel %vm50, %v51, %v34
  %v53 = vshrl.u32 %v52, 4
  %v54 = vand.u32 %v52, 15
  %v55 = vsub.s32 0, %v54
  %v56 = vsel %vm50, %v55, %v54
  %vm57 = vcmp.lt.s32.totalorder %v35, 0
  %v58 = vsub.s32 0, %v35
  %v59 = vsel %vm57, %v58, %v35
  %v60 = vshrl.u32 %v59, 4
  %v61 = vand.u32 %v59, 15
  %v62 = vsub.s32 0, %v61
  %v63 = vsel %vm57, %v62, %v61
  %vm64 = vcmp.ne.s32.totalorder %v42, 0
  %vm65 = vcmp.ne.s32.totalorder %v49, 0
  %vm66 = vcmp.ne.s32.totalorder %v56, 0
  %vm67 = vcmp.ne.s32.totalorder %v63, 0
  %vm68 = vcmp.lt.s32.totalorder %v42, 0
  %vm69 = vcmp.lt.s32.totalorder %v49, 0
  %vm70 = vcmp.lt.s32.totalorder %v56, 0
  %vm71 = vcmp.lt.s32.totalorder %v63, 0
  %vm72 = vmand %vm68, %vm64
  %vm73 = vmand %vm69, %vm65
  %vm74 = vmand %vm70, %vm66
  %vm75 = vmand %vm71, %vm67
  %v76 = vadd.s32 %v42, 16
  %v77 = vadd.s32 %v49, 16
  %v78 = vadd.s32 %v56, 16
  %v79 = vadd.s32 %v63, 16
  %v80 = vsel %vm72, %v76, %v42
  %v81 = vsel %vm73, %v77, %v49
  %v82 = vsel %vm74, %v78, %v56
  %v83 = vsel %vm75, %v79, %v63
  %vm84 = vcmp.ge.s32.totalorder %v80, 1
  %vm85 = vcmp.ge.s32.totalorder %v81, 1
  %vm86 = vcmp.ge.s32.totalorder %v82, 1
  %vm87 = vcmp.ge.s32.totalorder %v83, 1
  %vm88 = vcmp.lt.s32.totalorder %v80, 15
  %vm89 = vcmp.lt.s32.totalorder %v81, 15
  %vm90 = vcmp.lt.s32.totalorder %v82, 15
  %vm91 = vcmp.lt.s32.totalorder %v83, 15
  %v92 = vld [vmem:[%s6] sm:$0x1]
  %v93 = vld [vmem:[%s6 + $0x1] sm:$0x1]
  %v94 = vld [vmem:[%s1] sm:$0xff]
  %v95 = vld [vmem:[%s1 + $0x8] sm:$0xff]
  %v96 = vld [vmem:[%s1 + $0x10] sm:$0xff]
  %v97 = vld [vmem:[%s1 + $0x18] sm:$0xff]
  %v98 = vld [vmem:[%s1 + $0x20] sm:$0xff]
  %v99 = vld [vmem:[%s1 + $0x28] sm:$0xff]
  %v100 = vld [vmem:[%s1 + $0x30] sm:$0xff]
  %v101 = vld [vmem:[%s1 + $0x38] sm:$0xff]
  %vm102 = vcmask 523264
  %v103 = vsel %vm102, %v27, 0.0
  %v104 = vsel %vm102, %v28, 0.0
  %v105 = vadd.f32 %v103, %v104
  %v106 = vsel %vm102, %v29, 0.0
  %v107 = vadd.f32 %v105, %v106
  %v108 = vsel %vm102, %v30, 0.0
  %v109 = vadd.f32 %v107, %v108
  %v110 = vrot.slane %v109, 4
  %v111 = vadd.f32 %v109, %v110
  %v112 = vrot.slane %v111, 2
  %v113 = vadd.f32 %v111, %v112
  %v114 = vrot.slane %v113, 1
  %v115 = vadd.f32 %v113, %v114
  %v116 = vrcp.pop 32.0
  %v117 = vmul.f32 %v115, %v116
  %v119 = vsel %vm102, %v117, 0
  %121 = vmatprep.subr.mxu0 0.0
  %122 = vmatpush1.msra.mxu0 0.0
  %123 = vmatprep.subr.mxu0 0.0
  %124 = vmatpush1.msra.mxu0 0.0
  %125 = vmatprep.subr.mxu0 0.0
  %126 = vmatpush1.msra.mxu0 0.0
  %127 = vmatprep.subr.mxu0 0.0
  %128 = vmatpush1.msra.mxu0 0.0
  %129 = vmatprep.subr.mxu0 0.0
  %130 = vmatpush1.msra.mxu0 0.0
  %131 = vmatprep.subr.mxu0 0.0
  %132 = vmatpush1.msra.mxu0 0.0
  %133 = vmatprep.subr.mxu0 0.0
  %134 = vmatpush1.msra.mxu0 0.0
  %135 = vmatprep.subr.mxu0 0.0
  %136 = vmatpush1.msra.mxu0 0.0
  %137 = vmatprep.subr.mxu0 0.0
  %138 = vmatpush1.msra.mxu0 %v101
  %139 = vmatprep.subr.mxu0 0.0
  %140 = vmatpush1.msra.mxu0 %v100
  %141 = vmatprep.subr.mxu0 0.0
  %142 = vmatpush1.msra.mxu0 %v99
  %143 = vmatprep.subr.mxu0 0.0
  %144 = vmatpush1.msra.mxu0 %v98
  %145 = vmatprep.subr.mxu0 0.0
  %146 = vmatpush1.msra.mxu0 %v97
  %147 = vmatprep.subr.mxu0 0.0
  %148 = vmatpush1.msra.mxu0 %v96
  %149 = vmatprep.subr.mxu0 0.0
  %150 = vmatpush1.msra.mxu0 %v95
  %151 = vmatprep.subr.mxu0 0.0
  %152 = vmatpush1.msra.mxu0 %v94
  %153 = vmatprep.subr.mxu0 0.0
  %154 = vmatpush2.msra.mxu0 0.0
  %155 = vmatprep.subr.mxu0 0.0
  %156 = vmatpush2.msra.mxu0 0.0
  %157 = vmatprep.subr.mxu0 0.0
  %158 = vmatpush2.msra.mxu0 0.0
  %159 = vmatprep.subr.mxu0 0.0
  %160 = vmatpush2.msra.mxu0 0.0
  %161 = vmatprep.subr.mxu0 0.0
  %162 = vmatpush2.msra.mxu0 0.0
  %163 = vmatprep.subr.mxu0 0.0
  %164 = vmatpush2.msra.mxu0 0.0
  %165 = vmatprep.subr.mxu0 0.0
  %166 = vmatpush2.msra.mxu0 0.0
  %167 = vmatprep.subr.mxu0 0.0
  %168 = vmatpush2.msra.mxu0 0.0
  %169 = vmatprep.subr.mxu0 0.0
  %170 = vmatpush2.msra.mxu0 0.0
  %171 = vmatprep.subr.mxu0 0.0
  %172 = vmatpush2.msra.mxu0 0.0
  %173 = vmatprep.subr.mxu0 0.0
  %174 = vmatpush2.msra.mxu0 0.0
  %175 = vmatprep.subr.mxu0 0.0
  %176 = vmatpush2.msra.mxu0 0.0
  %177 = vmatprep.subr.mxu0 0.0
  %178 = vmatpush2.msra.mxu0 0.0
  %179 = vmatprep.subr.mxu0 0.0
  %180 = vmatpush2.msra.mxu0 0.0
  %181 = vmatprep.subr.mxu0 0.0
  %182 = vmatpush2.msra.mxu0 0.0
  %183 = vmatprep.subr.mxu0 0.0
  %184 = vmatpush2.msra.mxu0 0.0
  %185 = vmatprep.mubr.f32.mxu0 0.0
  %186 = vmatmul.mubr.f32.gmra.mxu0 %v119
  %v187 = vpop.f32.mrf.mxu0
  %v188 = vadd.f32 0.0, %v187
  %v189 = vpop.f32.mrf.mxu0
  %190 = vdwg.mxu0
  %v191 = vlaneseq
  %v192 = vshrl.u32 %v191, 7
  %v193 = vsub.s32 0, %v192
  %v194 = vrot.slane %v188, %v193
  %v195 = vsub.f32 %v27, %v194
  %v196 = vsub.f32 %v28, %v194
  %v197 = vsub.f32 %v29, %v194
  %v198 = vsub.f32 %v30, %v194
  %v199 = vmul.f32 %v195, %v195
  %v200 = vmul.f32 %v196, %v196
  %v201 = vmul.f32 %v197, %v197
  %v202 = vmul.f32 %v198, %v198
  %v203 = vsel %vm102, %v199, 0.0
  %v204 = vsel %vm102, %v200, 0.0
  %v205 = vadd.f32 %v203, %v204
  %v206 = vsel %vm102, %v201, 0.0
  %v207 = vadd.f32 %v205, %v206
  %v208 = vsel %vm102, %v202, 0.0
  %v209 = vadd.f32 %v207, %v208
  %v210 = vrot.slane %v209, 4
  %v211 = vadd.f32 %v209, %v210
  %v212 = vrot.slane %v211, 2
  %v213 = vadd.f32 %v211, %v212
  %v214 = vrot.slane %v213, 1
  %v215 = vadd.f32 %v213, %v214
  %v216 = vmul.f32 %v215, %v116
  %v218 = vsel %vm102, %v216, 0
  %220 = vmatprep.subr.mxu0 0.0
  %221 = vmatpush1.msra.mxu0 0.0
  %222 = vmatprep.subr.mxu0 0.0
  %223 = vmatpush1.msra.mxu0 0.0
  %224 = vmatprep.subr.mxu0 0.0
  %225 = vmatpush1.msra.mxu0 0.0
  %226 = vmatprep.subr.mxu0 0.0
  %227 = vmatpush1.msra.mxu0 0.0
  %228 = vmatprep.subr.mxu0 0.0
  %229 = vmatpush1.msra.mxu0 0.0
  %230 = vmatprep.subr.mxu0 0.0
  %231 = vmatpush1.msra.mxu0 0.0
  %232 = vmatprep.subr.mxu0 0.0
  %233 = vmatpush1.msra.mxu0 0.0
  %234 = vmatprep.subr.mxu0 0.0
  %235 = vmatpush1.msra.mxu0 0.0
  %236 = vmatprep.subr.mxu0 0.0
  %237 = vmatpush1.msra.mxu0 %v101
  %238 = vmatprep.subr.mxu0 0.0
  %239 = vmatpush1.msra.mxu0 %v100
  %240 = vmatprep.subr.mxu0 0.0
  %241 = vmatpush1.msra.mxu0 %v99
  %242 = vmatprep.subr.mxu0 0.0
  %243 = vmatpush1.msra.mxu0 %v98
  %244 = vmatprep.subr.mxu0 0.0
  %245 = vmatpush1.msra.mxu0 %v97
  %246 = vmatprep.subr.mxu0 0.0
  %247 = vmatpush1.msra.mxu0 %v96
  %248 = vmatprep.subr.mxu0 0.0
  %249 = vmatpush1.msra.mxu0 %v95
  %250 = vmatprep.subr.mxu0 0.0
  %251 = vmatpush1.msra.mxu0 %v94
  %252 = vmatprep.subr.mxu0 0.0
  %253 = vmatpush2.msra.mxu0 0.0
  %254 = vmatprep.subr.mxu0 0.0
  %255 = vmatpush2.msra.mxu0 0.0
  %256 = vmatprep.subr.mxu0 0.0
  %257 = vmatpush2.msra.mxu0 0.0
  %258 = vmatprep.subr.mxu0 0.0
  %259 = vmatpush2.msra.mxu0 0.0
  %260 = vmatprep.subr.mxu0 0.0
  %261 = vmatpush2.msra.mxu0 0.0
  %262 = vmatprep.subr.mxu0 0.0
  %263 = vmatpush2.msra.mxu0 0.0
  %264 = vmatprep.subr.mxu0 0.0
  %265 = vmatpush2.msra.mxu0 0.0
  %266 = vmatprep.subr.mxu0 0.0
  %267 = vmatpush2.msra.mxu0 0.0
  %268 = vmatprep.subr.mxu0 0.0
  %269 = vmatpush2.msra.mxu0 0.0
  %270 = vmatprep.subr.mxu0 0.0
  %271 = vmatpush2.msra.mxu0 0.0
  %272 = vmatprep.subr.mxu0 0.0
  %273 = vmatpush2.msra.mxu0 0.0
  %274 = vmatprep.subr.mxu0 0.0
  %275 = vmatpush2.msra.mxu0 0.0
  %276 = vmatprep.subr.mxu0 0.0
  %277 = vmatpush2.msra.mxu0 0.0
  %278 = vmatprep.subr.mxu0 0.0
  %279 = vmatpush2.msra.mxu0 0.0
  %280 = vmatprep.subr.mxu0 0.0
  %281 = vmatpush2.msra.mxu0 0.0
  %282 = vmatprep.subr.mxu0 0.0
  %283 = vmatpush2.msra.mxu0 0.0
  %284 = vmatprep.mubr.f32.mxu0 0.0
  %285 = vmatmul.mubr.f32.gmra.mxu0 %v218
  %v286 = vpop.f32.mrf.mxu0
  %v287 = vadd.f32 1e-05, %v286
  %v288 = vpop.f32.mrf.mxu0
  %289 = vdwg.mxu0
  %v290 = vrsqrt.pop %v287
  %v291 = vmul.f32 %v92, %v290
  %v292 = vlaneseq
  %v293 = vshrl.u32 %v292, 7
  %v294 = vsub.s32 0, %v293
  %v295 = vrot.slane %v291, %v294
  %v296 = vmul.f32 %v195, %v295
  %v297 = vmul.f32 %v196, %v295
  %v298 = vmul.f32 %v197, %v295
  %v299 = vmul.f32 %v198, %v295
  %v300 = vlaneseq
  %v301 = vshrl.u32 %v300, 7
  %v302 = vsub.s32 0, %v301
  %v303 = vrot.slane %v93, %v302
  %v304 = vadd.f32 %v296, %v303
  %v305 = vadd.f32 %v297, %v303
  %v306 = vadd.f32 %v298, %v303
  %v307 = vadd.f32 %v299, %v303
  %v308 = vmax.f32 %v304, 0.0
  %v309 = vmax.f32 %v305, 0.0
  %v310 = vmax.f32 %v306, 0.0
  %v311 = vmax.f32 %v307, 0.0
  %v312 = vrot.slane %v308, 7
  %v313 = vrot.slane %v309, 7
  %v314 = vrot.slane %v310, 7
  %v315 = vrot.slane %v311, 7
  %vm316 = vcmp.lt.s32.totalorder %v32, 1
  %v317 = vsel %vm316, %v314, %v315
  %v318 = vsel %vm316, %v313, %v314
  %v319 = vsel %vm316, %v312, %v313
  %v320 = vsel %vm316, %v315, %v312
  %v321 = vsel %vm84, 1, 0
  %v322 = vsel %vm85, 1, 0
  %v323 = vsel %vm86, 1, 0
  %v324 = vsel %vm87, 1, 0
  %vm325 = vcmp.eq.s32.totalorder %v321, 1
  %vm326 = vcmp.eq.s32.totalorder %v322, 1
  %vm327 = vcmp.eq.s32.totalorder %v323, 1
  %vm328 = vcmp.eq.s32.totalorder %v324, 1
  %v329 = vsel %vm325, %v320, 0.0
  %v330 = vsel %vm326, %v319, 0.0
  %v331 = vsel %vm327, %v318, 0.0
  %v332 = vsel %vm328, %v317, 0.0
  %v333 = vrot.slane %v308, 1
  %v334 = vrot.slane %v309, 1
  %v335 = vrot.slane %v310, 1
  %v336 = vrot.slane %v311, 1
  %vm337 = vcmp.lt.s32.totalorder %v32, 7
  %v338 = vsel %vm337, %v335, %v336
  %v339 = vsel %vm337, %v334, %v335
  %v340 = vsel %vm337, %v333, %v334
  %v341 = vsel %vm337, %v336, %v333
  %v342 = vsel %vm88, 1, 0
  %v343 = vsel %vm89, 1, 0
  %v344 = vsel %vm90, 1, 0
  %v345 = vsel %vm91, 1, 0
  %vm346 = vcmp.eq.s32.totalorder %v342, 1
  %vm347 = vcmp.eq.s32.totalorder %v343, 1
  %vm348 = vcmp.eq.s32.totalorder %v344, 1
  %vm349 = vcmp.eq.s32.totalorder %v345, 1
  %v350 = vsel %vm346, %v340, 0.0
  %v351 = vsel %vm347, %v339, 0.0
  %v352 = vsel %vm348, %v338, 0.0
  %v353 = vsel %vm349, %v341, 0.0
  %v354 = vpack.c.bf16 %v309, %v308
  %v355 = vpack.c.bf16 %v311, %v310
  %s356 = scalar_lea.vmem %s3, 32
  %v357 = vld [vmem:[%s356] sm:$0xf]
  %v358 = vld [vmem:[%s356 + $0x4] sm:$0xf]
  %v359 = vld [vmem:[%s356 + $0x8] sm:$0xf]
  %v360 = vld [vmem:[%s356 + $0xc] sm:$0xf]
  %v361 = vld [vmem:[%s356 + $0x10] sm:$0xf]
  %v362 = vld [vmem:[%s356 + $0x14] sm:$0xf]
  %v363 = vld [vmem:[%s356 + $0x18] sm:$0xf]
  %v364 = vld [vmem:[%s356 + $0x1c] sm:$0xf]
  %v365 = vpack.c.bf16 %v330, %v329
  %v366 = vpack.c.bf16 %v332, %v331
  %v367 = vld [vmem:[%s3] sm:$0xf]
  %v368 = vld [vmem:[%s3 + $0x4] sm:$0xf]
  %v369 = vld [vmem:[%s3 + $0x8] sm:$0xf]
  %v370 = vld [vmem:[%s3 + $0xc] sm:$0xf]
  %v371 = vld [vmem:[%s3 + $0x10] sm:$0xf]
  %v372 = vld [vmem:[%s3 + $0x14] sm:$0xf]
  %v373 = vld [vmem:[%s3 + $0x18] sm:$0xf]
  %v374 = vld [vmem:[%s3 + $0x1c] sm:$0xf]
  %v383 = vunpack.c.l.b16 %v367
  %v384 = vunpack.c.l.b16 %v368
  %v385 = vunpack.c.l.b16 %v369
  %v386 = vunpack.c.l.b16 %v370
  %v387 = vunpack.c.l.b16 %v371
  %v388 = vunpack.c.l.b16 %v372
  %v389 = vunpack.c.l.b16 %v373
  %v390 = vunpack.c.l.b16 %v374
  %v391 = vpack.c.b16 %v384, %v383
  %v392 = vpack.c.b16 %v386, %v385
  %v393 = vpack.c.b16 %v388, %v387
  %v394 = vpack.c.b16 %v390, %v389
  %v400 = vsel %vm102, %v365, 0
  %v403 = vsel %vm102, %v366, 0
  %405 = vmatprep.subr.bf16.mxu0 0
  %406 = vmatpush1.bf16.msra.mxu0 0
  %407 = vmatprep.subr.bf16.mxu0 0
  %408 = vmatpush1.bf16.msra.mxu0 0
  %409 = vmatprep.subr.bf16.mxu0 0
  %410 = vmatpush1.bf16.msra.mxu0 0
  %411 = vmatprep.subr.bf16.mxu0 0
  %412 = vmatpush1.bf16.msra.mxu0 0
  %413 = vmatprep.subr.bf16.mxu0 0
  %414 = vmatpush1.bf16.msra.mxu0 %v394
  %415 = vmatprep.subr.bf16.mxu0 0
  %416 = vmatpush1.bf16.msra.mxu0 %v393
  %417 = vmatprep.subr.bf16.mxu0 0
  %418 = vmatpush1.bf16.msra.mxu0 %v392
  %419 = vmatprep.subr.bf16.mxu0 0
  %420 = vmatpush1.bf16.msra.mxu0 %v391
  %421 = vmatprep.subr.bf16.mxu0 0
  %422 = vmatpush2.bf16.msra.mxu0 0
  %423 = vmatprep.subr.bf16.mxu0 0
  %424 = vmatpush2.bf16.msra.mxu0 0
  %425 = vmatprep.subr.bf16.mxu0 0
  %426 = vmatpush2.bf16.msra.mxu0 0
  %427 = vmatprep.subr.bf16.mxu0 0
  %428 = vmatpush2.bf16.msra.mxu0 0
  %429 = vmatprep.subr.bf16.mxu0 0
  %430 = vmatpush2.bf16.msra.mxu0 0
  %431 = vmatprep.subr.bf16.mxu0 0
  %432 = vmatpush2.bf16.msra.mxu0 0
  %433 = vmatprep.subr.bf16.mxu0 0
  %434 = vmatpush2.bf16.msra.mxu0 0
  %435 = vmatprep.subr.bf16.mxu0 0
  %436 = vmatpush2.bf16.msra.mxu0 0
  %437 = vmatprep.mubr.bf16.mxu0 0
  %438 = vmatmul.mubr.bf16.gmra.mxu0 %v400
  %v439 = vpop.f32.mrf.mxu0
  %v440 = vadd.f32 0.0, %v439
  %v441 = vpop.f32.mrf.mxu0
  %v442 = vpop.f32.mrf.mxu0
  %v443 = vadd.f32 0.0, %v442
  %v444 = vpop.f32.mrf.mxu0
  %445 = vmatprep.mubr.bf16.mxu0 0
  %446 = vmatmul.mubr.bf16.gmra.mxu0 %v403
  %v447 = vpop.f32.mrf.mxu0
  %v448 = vadd.f32 0.0, %v447
  %v449 = vpop.f32.mrf.mxu0
  %v450 = vpop.f32.mrf.mxu0
  %v451 = vadd.f32 0.0, %v450
  %v452 = vpop.f32.mrf.mxu0
  %453 = vdwg.mxu0
  %v462 = vunpack.c.l.b16 %v357
  %v463 = vunpack.c.l.b16 %v358
  %v464 = vunpack.c.l.b16 %v359
  %v465 = vunpack.c.l.b16 %v360
  %v466 = vunpack.c.l.b16 %v361
  %v467 = vunpack.c.l.b16 %v362
  %v468 = vunpack.c.l.b16 %v363
  %v469 = vunpack.c.l.b16 %v364
  %v470 = vpack.c.b16 %v463, %v462
  %v471 = vpack.c.b16 %v465, %v464
  %v472 = vpack.c.b16 %v467, %v466
  %v473 = vpack.c.b16 %v469, %v468
  %v479 = vsel %vm102, %v354, 0
  %v482 = vsel %vm102, %v355, 0
  %484 = vmatprep.subr.bf16.mxu0 0
  %485 = vmatpush1.bf16.msra.mxu0 0
  %486 = vmatprep.subr.bf16.mxu0 0
  %487 = vmatpush1.bf16.msra.mxu0 0
  %488 = vmatprep.subr.bf16.mxu0 0
  %489 = vmatpush1.bf16.msra.mxu0 0
  %490 = vmatprep.subr.bf16.mxu0 0
  %491 = vmatpush1.bf16.msra.mxu0 0
  %492 = vmatprep.subr.bf16.mxu0 0
  %493 = vmatpush1.bf16.msra.mxu0 %v473
  %494 = vmatprep.subr.bf16.mxu0 0
  %495 = vmatpush1.bf16.msra.mxu0 %v472
  %496 = vmatprep.subr.bf16.mxu0 0
  %497 = vmatpush1.bf16.msra.mxu0 %v471
  %498 = vmatprep.subr.bf16.mxu0 0
  %499 = vmatpush1.bf16.msra.mxu0 %v470
  %500 = vmatprep.subr.bf16.mxu0 0
  %501 = vmatpush2.bf16.msra.mxu0 0
  %502 = vmatprep.subr.bf16.mxu0 0
  %503 = vmatpush2.bf16.msra.mxu0 0
  %504 = vmatprep.subr.bf16.mxu0 0
  %505 = vmatpush2.bf16.msra.mxu0 0
  %506 = vmatprep.subr.bf16.mxu0 0
  %507 = vmatpush2.bf16.msra.mxu0 0
  %508 = vmatprep.subr.bf16.mxu0 0
  %509 = vmatpush2.bf16.msra.mxu0 0
  %510 = vmatprep.subr.bf16.mxu0 0
  %511 = vmatpush2.bf16.msra.mxu0 0
  %512 = vmatprep.subr.bf16.mxu0 0
  %513 = vmatpush2.bf16.msra.mxu0 0
  %514 = vmatprep.subr.bf16.mxu0 0
  %515 = vmatpush2.bf16.msra.mxu0 0
  %516 = vmatprep.mubr.bf16.mxu0 0
  %517 = vmatmul.mubr.bf16.gmra.mxu0 %v479
  %v518 = vpop.f32.mrf.mxu0
  %v519 = vadd.f32 %v440, %v518
  %v520 = vpop.f32.mrf.mxu0
  %v521 = vpop.f32.mrf.mxu0
  %v522 = vadd.f32 %v443, %v521
  %v523 = vpop.f32.mrf.mxu0
  %524 = vmatprep.mubr.bf16.mxu0 0
  %525 = vmatmul.mubr.bf16.gmra.mxu0 %v482
  %v526 = vpop.f32.mrf.mxu0
  %v527 = vadd.f32 %v448, %v526
  %v528 = vpop.f32.mrf.mxu0
  %v529 = vpop.f32.mrf.mxu0
  %v530 = vadd.f32 %v451, %v529
  %v531 = vpop.f32.mrf.mxu0
  %532 = vdwg.mxu0
  %v533 = vpack.c.bf16 %v351, %v350
  %v534 = vpack.c.bf16 %v353, %v352
  %s535 = scalar_lea.vmem %s3, 64
  %v536 = vld [vmem:[%s535] sm:$0xf]
  %v537 = vld [vmem:[%s535 + $0x4] sm:$0xf]
  %v538 = vld [vmem:[%s535 + $0x8] sm:$0xf]
  %v539 = vld [vmem:[%s535 + $0xc] sm:$0xf]
  %v540 = vld [vmem:[%s535 + $0x10] sm:$0xf]
  %v541 = vld [vmem:[%s535 + $0x14] sm:$0xf]
  %v542 = vld [vmem:[%s535 + $0x18] sm:$0xf]
  %v543 = vld [vmem:[%s535 + $0x1c] sm:$0xf]
  %v552 = vunpack.c.l.b16 %v536
  %v553 = vunpack.c.l.b16 %v537
  %v554 = vunpack.c.l.b16 %v538
  %v555 = vunpack.c.l.b16 %v539
  %v556 = vunpack.c.l.b16 %v540
  %v557 = vunpack.c.l.b16 %v541
  %v558 = vunpack.c.l.b16 %v542
  %v559 = vunpack.c.l.b16 %v543
  %v560 = vpack.c.b16 %v553, %v552
  %v561 = vpack.c.b16 %v555, %v554
  %v562 = vpack.c.b16 %v557, %v556
  %v563 = vpack.c.b16 %v559, %v558
  %v569 = vsel %vm102, %v533, 0
  %v572 = vsel %vm102, %v534, 0
  %574 = vmatprep.subr.bf16.mxu0 0
  %575 = vmatpush1.bf16.msra.mxu0 0
  %576 = vmatprep.subr.bf16.mxu0 0
  %577 = vmatpush1.bf16.msra.mxu0 0
  %578 = vmatprep.subr.bf16.mxu0 0
  %579 = vmatpush1.bf16.msra.mxu0 0
  %580 = vmatprep.subr.bf16.mxu0 0
  %581 = vmatpush1.bf16.msra.mxu0 0
  %582 = vmatprep.subr.bf16.mxu0 0
  %583 = vmatpush1.bf16.msra.mxu0 %v563
  %584 = vmatprep.subr.bf16.mxu0 0
  %585 = vmatpush1.bf16.msra.mxu0 %v562
  %586 = vmatprep.subr.bf16.mxu0 0
  %587 = vmatpush1.bf16.msra.mxu0 %v561
  %588 = vmatprep.subr.bf16.mxu0 0
  %589 = vmatpush1.bf16.msra.mxu0 %v560
  %590 = vmatprep.subr.bf16.mxu0 0
  %591 = vmatpush2.bf16.msra.mxu0 0
  %592 = vmatprep.subr.bf16.mxu0 0
  %593 = vmatpush2.bf16.msra.mxu0 0
  %594 = vmatprep.subr.bf16.mxu0 0
  %595 = vmatpush2.bf16.msra.mxu0 0
  %596 = vmatprep.subr.bf16.mxu0 0
  %597 = vmatpush2.bf16.msra.mxu0 0
  %598 = vmatprep.subr.bf16.mxu0 0
  %599 = vmatpush2.bf16.msra.mxu0 0
  %600 = vmatprep.subr.bf16.mxu0 0
  %601 = vmatpush2.bf16.msra.mxu0 0
  %602 = vmatprep.subr.bf16.mxu0 0
  %603 = vmatpush2.bf16.msra.mxu0 0
  %604 = vmatprep.subr.bf16.mxu0 0
  %605 = vmatpush2.bf16.msra.mxu0 0
  %606 = vmatprep.mubr.bf16.mxu0 0
  %607 = vmatmul.mubr.bf16.gmra.mxu0 %v569
  %v608 = vpop.f32.mrf.mxu0
  %v609 = vadd.f32 0.0, %v608
  %v610 = vpop.f32.mrf.mxu0
  %v611 = vpop.f32.mrf.mxu0
  %v612 = vadd.f32 0.0, %v611
  %v613 = vpop.f32.mrf.mxu0
  %614 = vmatprep.mubr.bf16.mxu0 0
  %615 = vmatmul.mubr.bf16.gmra.mxu0 %v572
  %v616 = vpop.f32.mrf.mxu0
  %v617 = vadd.f32 0.0, %v616
  %v618 = vpop.f32.mrf.mxu0
  %v619 = vpop.f32.mrf.mxu0
  %v620 = vadd.f32 0.0, %v619
  %v621 = vpop.f32.mrf.mxu0
  %622 = vdwg.mxu0
  %v623 = vadd.f32 %v519, %v609
  %v624 = vadd.f32 %v522, %v612
  %v625 = vadd.f32 %v527, %v617
  %v626 = vadd.f32 %v530, %v620
  %v627 = vld [vmem:[%s6 + $0x2] sm:$0x1]
  %v628 = vld [vmem:[%s6 + $0x3] sm:$0x1]
  %v629 = vld [vmem:[%s2] sm:$0xff]
  %v630 = vld [vmem:[%s2 + $0x8] sm:$0xff]
  %v631 = vld [vmem:[%s2 + $0x10] sm:$0xff]
  %v632 = vld [vmem:[%s2 + $0x18] sm:$0xff]
  %v633 = vld [vmem:[%s2 + $0x20] sm:$0xff]
  %v634 = vld [vmem:[%s2 + $0x28] sm:$0xff]
  %v635 = vld [vmem:[%s2 + $0x30] sm:$0xff]
  %v636 = vld [vmem:[%s2 + $0x38] sm:$0xff]
  %v637 = vld [vmem:[%s2 + $0x40] sm:$0xff]
  %v638 = vld [vmem:[%s2 + $0x48] sm:$0xff]
  %v639 = vld [vmem:[%s2 + $0x50] sm:$0xff]
  %v640 = vld [vmem:[%s2 + $0x58] sm:$0xff]
  %v641 = vld [vmem:[%s2 + $0x60] sm:$0xff]
  %v642 = vld [vmem:[%s2 + $0x68] sm:$0xff]
  %v643 = vld [vmem:[%s2 + $0x70] sm:$0xff]
  %v644 = vld [vmem:[%s2 + $0x78] sm:$0xff]
  %v645 = vadd.f32 %v623, %v624
  %v646 = vadd.f32 %v645, %v625
  %v647 = vadd.f32 %v646, %v626
  %v648 = vrot.slane %v647, 4
  %v649 = vadd.f32 %v647, %v648
  %v650 = vrot.slane %v649, 2
  %v651 = vadd.f32 %v649, %v650
  %v652 = vrot.slane %v651, 1
  %v653 = vadd.f32 %v651, %v652
  %v654 = vmul.f32 %v653, %v116
  %655 = vmatprep.subr.mxu0 0.0
  %656 = vmatpush1.msra.mxu0 %v644
  %657 = vmatprep.subr.mxu0 0.0
  %658 = vmatpush1.msra.mxu0 %v643
  %659 = vmatprep.subr.mxu0 0.0
  %660 = vmatpush1.msra.mxu0 %v642
  %661 = vmatprep.subr.mxu0 0.0
  %662 = vmatpush1.msra.mxu0 %v641
  %663 = vmatprep.subr.mxu0 0.0
  %664 = vmatpush1.msra.mxu0 %v640
  %665 = vmatprep.subr.mxu0 0.0
  %666 = vmatpush1.msra.mxu0 %v639
  %667 = vmatprep.subr.mxu0 0.0
  %668 = vmatpush1.msra.mxu0 %v638
  %669 = vmatprep.subr.mxu0 0.0
  %670 = vmatpush1.msra.mxu0 %v637
  %671 = vmatprep.subr.mxu0 0.0
  %672 = vmatpush1.msra.mxu0 %v636
  %673 = vmatprep.subr.mxu0 0.0
  %674 = vmatpush1.msra.mxu0 %v635
  %675 = vmatprep.subr.mxu0 0.0
  %676 = vmatpush1.msra.mxu0 %v634
  %677 = vmatprep.subr.mxu0 0.0
  %678 = vmatpush1.msra.mxu0 %v633
  %679 = vmatprep.subr.mxu0 0.0
  %680 = vmatpush1.msra.mxu0 %v632
  %681 = vmatprep.subr.mxu0 0.0
  %682 = vmatpush1.msra.mxu0 %v631
  %683 = vmatprep.subr.mxu0 0.0
  %684 = vmatpush1.msra.mxu0 %v630
  %685 = vmatprep.subr.mxu0 0.0
  %686 = vmatpush1.msra.mxu0 %v629
  %687 = vmatprep.subr.mxu0 0.0
  %688 = vmatpush2.msra.mxu0 0.0
  %689 = vmatprep.subr.mxu0 0.0
  %690 = vmatpush2.msra.mxu0 0.0
  %691 = vmatprep.subr.mxu0 0.0
  %692 = vmatpush2.msra.mxu0 0.0
  %693 = vmatprep.subr.mxu0 0.0
  %694 = vmatpush2.msra.mxu0 0.0
  %695 = vmatprep.subr.mxu0 0.0
  %696 = vmatpush2.msra.mxu0 0.0
  %697 = vmatprep.subr.mxu0 0.0
  %698 = vmatpush2.msra.mxu0 0.0
  %699 = vmatprep.subr.mxu0 0.0
  %700 = vmatpush2.msra.mxu0 0.0
  %701 = vmatprep.subr.mxu0 0.0
  %702 = vmatpush2.msra.mxu0 0.0
  %703 = vmatprep.subr.mxu0 0.0
  %704 = vmatpush2.msra.mxu0 0.0
  %705 = vmatprep.subr.mxu0 0.0
  %706 = vmatpush2.msra.mxu0 0.0
  %707 = vmatprep.subr.mxu0 0.0
  %708 = vmatpush2.msra.mxu0 0.0
  %709 = vmatprep.subr.mxu0 0.0
  %710 = vmatpush2.msra.mxu0 0.0
  %711 = vmatprep.subr.mxu0 0.0
  %712 = vmatpush2.msra.mxu0 0.0
  %713 = vmatprep.subr.mxu0 0.0
  %714 = vmatpush2.msra.mxu0 0.0
  %715 = vmatprep.subr.mxu0 0.0
  %716 = vmatpush2.msra.mxu0 0.0
  %717 = vmatprep.subr.mxu0 0.0
  %718 = vmatpush2.msra.mxu0 0.0
  %719 = vmatprep.mubr.f32.mxu0 0.0
  %720 = vmatmul.mubr.f32.gmra.mxu0 %v654
  %v721 = vpop.f32.mrf.mxu0
  %v722 = vadd.f32 0.0, %v721
  %v723 = vpop.f32.mrf.mxu0
  %724 = vdwg.mxu0
  %v725 = vlaneseq
  %v726 = vshrl.u32 %v725, 7
  %v727 = vsub.s32 0, %v726
  %v728 = vrot.slane %v722, %v727
  %v729 = vsub.f32 %v623, %v728
  %v730 = vsub.f32 %v624, %v728
  %v731 = vsub.f32 %v625, %v728
  %v732 = vsub.f32 %v626, %v728
  %v733 = vmul.f32 %v729, %v729
  %v734 = vmul.f32 %v730, %v730
  %v735 = vmul.f32 %v731, %v731
  %v736 = vmul.f32 %v732, %v732
  %v737 = vadd.f32 %v733, %v734
  %v738 = vadd.f32 %v737, %v735
  %v739 = vadd.f32 %v738, %v736
  %v740 = vrot.slane %v739, 4
  %v741 = vadd.f32 %v739, %v740
  %v742 = vrot.slane %v741, 2
  %v743 = vadd.f32 %v741, %v742
  %v744 = vrot.slane %v743, 1
  %v745 = vadd.f32 %v743, %v744
  %v746 = vmul.f32 %v745, %v116
  %747 = vmatprep.subr.mxu0 0.0
  %748 = vmatpush1.msra.mxu0 %v644
  %749 = vmatprep.subr.mxu0 0.0
  %750 = vmatpush1.msra.mxu0 %v643
  %751 = vmatprep.subr.mxu0 0.0
  %752 = vmatpush1.msra.mxu0 %v642
  %753 = vmatprep.subr.mxu0 0.0
  %754 = vmatpush1.msra.mxu0 %v641
  %755 = vmatprep.subr.mxu0 0.0
  %756 = vmatpush1.msra.mxu0 %v640
  %757 = vmatprep.subr.mxu0 0.0
  %758 = vmatpush1.msra.mxu0 %v639
  %759 = vmatprep.subr.mxu0 0.0
  %760 = vmatpush1.msra.mxu0 %v638
  %761 = vmatprep.subr.mxu0 0.0
  %762 = vmatpush1.msra.mxu0 %v637
  %763 = vmatprep.subr.mxu0 0.0
  %764 = vmatpush1.msra.mxu0 %v636
  %765 = vmatprep.subr.mxu0 0.0
  %766 = vmatpush1.msra.mxu0 %v635
  %767 = vmatprep.subr.mxu0 0.0
  %768 = vmatpush1.msra.mxu0 %v634
  %769 = vmatprep.subr.mxu0 0.0
  %770 = vmatpush1.msra.mxu0 %v633
  %771 = vmatprep.subr.mxu0 0.0
  %772 = vmatpush1.msra.mxu0 %v632
  %773 = vmatprep.subr.mxu0 0.0
  %774 = vmatpush1.msra.mxu0 %v631
  %775 = vmatprep.subr.mxu0 0.0
  %776 = vmatpush1.msra.mxu0 %v630
  %777 = vmatprep.subr.mxu0 0.0
  %778 = vmatpush1.msra.mxu0 %v629
  %779 = vmatprep.subr.mxu0 0.0
  %780 = vmatpush2.msra.mxu0 0.0
  %781 = vmatprep.subr.mxu0 0.0
  %782 = vmatpush2.msra.mxu0 0.0
  %783 = vmatprep.subr.mxu0 0.0
  %784 = vmatpush2.msra.mxu0 0.0
  %785 = vmatprep.subr.mxu0 0.0
  %786 = vmatpush2.msra.mxu0 0.0
  %787 = vmatprep.subr.mxu0 0.0
  %788 = vmatpush2.msra.mxu0 0.0
  %789 = vmatprep.subr.mxu0 0.0
  %790 = vmatpush2.msra.mxu0 0.0
  %791 = vmatprep.subr.mxu0 0.0
  %792 = vmatpush2.msra.mxu0 0.0
  %793 = vmatprep.subr.mxu0 0.0
  %794 = vmatpush2.msra.mxu0 0.0
  %795 = vmatprep.subr.mxu0 0.0
  %796 = vmatpush2.msra.mxu0 0.0
  %797 = vmatprep.subr.mxu0 0.0
  %798 = vmatpush2.msra.mxu0 0.0
  %799 = vmatprep.subr.mxu0 0.0
  %800 = vmatpush2.msra.mxu0 0.0
  %801 = vmatprep.subr.mxu0 0.0
  %802 = vmatpush2.msra.mxu0 0.0
  %803 = vmatprep.subr.mxu0 0.0
  %804 = vmatpush2.msra.mxu0 0.0
  %805 = vmatprep.subr.mxu0 0.0
  %806 = vmatpush2.msra.mxu0 0.0
  %807 = vmatprep.subr.mxu0 0.0
  %808 = vmatpush2.msra.mxu0 0.0
  %809 = vmatprep.subr.mxu0 0.0
  %810 = vmatpush2.msra.mxu0 0.0
  %811 = vmatprep.mubr.f32.mxu0 0.0
  %812 = vmatmul.mubr.f32.gmra.mxu0 %v746
  %v813 = vpop.f32.mrf.mxu0
  %v814 = vadd.f32 1e-05, %v813
  %v815 = vpop.f32.mrf.mxu0
  %816 = vdwg.mxu0
  %v817 = vrsqrt.pop %v814
  %v818 = vmul.f32 %v627, %v817
  %v819 = vlaneseq
  %v820 = vshrl.u32 %v819, 7
  %v821 = vsub.s32 0, %v820
  %v822 = vrot.slane %v818, %v821
  %v823 = vmul.f32 %v729, %v822
  %v824 = vmul.f32 %v730, %v822
  %v825 = vmul.f32 %v731, %v822
  %v826 = vmul.f32 %v732, %v822
  %v827 = vlaneseq
  %v828 = vshrl.u32 %v827, 7
  %v829 = vsub.s32 0, %v828
  %v830 = vrot.slane %v628, %v829
  %v831 = vadd.f32 %v823, %v830
  %v832 = vadd.f32 %v824, %v830
  %v833 = vadd.f32 %v825, %v830
  %v834 = vadd.f32 %v826, %v830
  %v835 = vmax.f32 %v831, 0.0
  %v836 = vmax.f32 %v832, 0.0
  %v837 = vmax.f32 %v833, 0.0
  %v838 = vmax.f32 %v834, 0.0
  %v839 = vrot.slane %v835, 7
  %v840 = vrot.slane %v836, 7
  %v841 = vrot.slane %v837, 7
  %v842 = vrot.slane %v838, 7
  %v843 = vsel %vm316, %v841, %v842
  %v844 = vsel %vm316, %v840, %v841
  %v845 = vsel %vm316, %v839, %v840
  %v846 = vsel %vm316, %v842, %v839
  %v847 = vsel %vm325, %v846, 0.0
  %v848 = vsel %vm326, %v845, 0.0
  %v849 = vsel %vm327, %v844, 0.0
  %v850 = vsel %vm328, %v843, 0.0
  %v851 = vrot.slane %v835, 1
  %v852 = vrot.slane %v836, 1
  %v853 = vrot.slane %v837, 1
  %v854 = vrot.slane %v838, 1
  %v855 = vsel %vm337, %v853, %v854
  %v856 = vsel %vm337, %v852, %v853
  %v857 = vsel %vm337, %v851, %v852
  %v858 = vsel %vm337, %v854, %v851
  %v859 = vsel %vm346, %v857, 0.0
  %v860 = vsel %vm347, %v856, 0.0
  %v861 = vsel %vm348, %v855, 0.0
  %v862 = vsel %vm349, %v858, 0.0
  %v863 = vpack.c.bf16 %v848, %v847
  %v864 = vpack.c.bf16 %v836, %v835
  %v865 = vpack.c.bf16 %v860, %v859
  %v866 = vpack.c.bf16 %v850, %v849
  %v867 = vpack.c.bf16 %v838, %v837
  %v868 = vpack.c.bf16 %v862, %v861
  %v869 = vld [vmem:[%s4] sm:$0xf]
  %v870 = vld [vmem:[%s4 + $0x4] sm:$0xf]
  %v871 = vld [vmem:[%s4 + $0x8] sm:$0xf]
  %v872 = vld [vmem:[%s4 + $0xc] sm:$0xf]
  %v873 = vld [vmem:[%s4 + $0x10] sm:$0xf]
  %v874 = vld [vmem:[%s4 + $0x14] sm:$0xf]
  %v875 = vld [vmem:[%s4 + $0x18] sm:$0xf]
  %v876 = vld [vmem:[%s4 + $0x1c] sm:$0xf]
  %v877 = vld [vmem:[%s4 + $0x20] sm:$0xf]
  %v878 = vld [vmem:[%s4 + $0x24] sm:$0xf]
  %v879 = vld [vmem:[%s4 + $0x28] sm:$0xf]
  %v880 = vld [vmem:[%s4 + $0x2c] sm:$0xf]
  %v881 = vld [vmem:[%s4 + $0x30] sm:$0xf]
  %v882 = vld [vmem:[%s4 + $0x34] sm:$0xf]
  %v883 = vld [vmem:[%s4 + $0x38] sm:$0xf]
  %v884 = vld [vmem:[%s4 + $0x3c] sm:$0xf]
  %v885 = vld [vmem:[%s4 + $0x40] sm:$0xf]
  %v886 = vld [vmem:[%s4 + $0x44] sm:$0xf]
  %v887 = vld [vmem:[%s4 + $0x48] sm:$0xf]
  %v888 = vld [vmem:[%s4 + $0x4c] sm:$0xf]
  %v889 = vld [vmem:[%s4 + $0x50] sm:$0xf]
  %v890 = vld [vmem:[%s4 + $0x54] sm:$0xf]
  %v891 = vld [vmem:[%s4 + $0x58] sm:$0xf]
  %v892 = vld [vmem:[%s4 + $0x5c] sm:$0xf]
  %v893 = vld [vmem:[%s4 + $0x60] sm:$0xf]
  %v894 = vld [vmem:[%s4 + $0x64] sm:$0xf]
  %v895 = vld [vmem:[%s4 + $0x68] sm:$0xf]
  %v896 = vld [vmem:[%s4 + $0x6c] sm:$0xf]
  %v897 = vld [vmem:[%s4 + $0x70] sm:$0xf]
  %v898 = vld [vmem:[%s4 + $0x74] sm:$0xf]
  %v899 = vld [vmem:[%s4 + $0x78] sm:$0xf]
  %v900 = vld [vmem:[%s4 + $0x7c] sm:$0xf]
  %v901 = vld [vmem:[%s4 + $0x80] sm:$0xf]
  %v902 = vld [vmem:[%s4 + $0x84] sm:$0xf]
  %v903 = vld [vmem:[%s4 + $0x88] sm:$0xf]
  %v904 = vld [vmem:[%s4 + $0x8c] sm:$0xf]
  %v905 = vld [vmem:[%s4 + $0x90] sm:$0xf]
  %v906 = vld [vmem:[%s4 + $0x94] sm:$0xf]
  %v907 = vld [vmem:[%s4 + $0x98] sm:$0xf]
  %v908 = vld [vmem:[%s4 + $0x9c] sm:$0xf]
  %v909 = vld [vmem:[%s4 + $0xa0] sm:$0xf]
  %v910 = vld [vmem:[%s4 + $0xa4] sm:$0xf]
  %v911 = vld [vmem:[%s4 + $0xa8] sm:$0xf]
  %v912 = vld [vmem:[%s4 + $0xac] sm:$0xf]
  %v913 = vld [vmem:[%s4 + $0xb0] sm:$0xf]
  %v914 = vld [vmem:[%s4 + $0xb4] sm:$0xf]
  %v915 = vld [vmem:[%s4 + $0xb8] sm:$0xf]
  %v916 = vld [vmem:[%s4 + $0xbc] sm:$0xf]
  %v917 = vpack.c.bf16 %v28, %v27
  %v918 = vpack.c.bf16 %v30, %v29
  %v919 = vld [vmem:[%s5] sm:$0xf]
  %v920 = vld [vmem:[%s5 + $0x4] sm:$0xf]
  %v921 = vld [vmem:[%s5 + $0x8] sm:$0xf]
  %v922 = vld [vmem:[%s5 + $0xc] sm:$0xf]
  %v923 = vld [vmem:[%s5 + $0x10] sm:$0xf]
  %v924 = vld [vmem:[%s5 + $0x14] sm:$0xf]
  %v925 = vld [vmem:[%s5 + $0x18] sm:$0xf]
  %v926 = vld [vmem:[%s5 + $0x1c] sm:$0xf]
  %v935 = vunpack.c.l.b16 %v919
  %v936 = vunpack.c.l.b16 %v920
  %v937 = vunpack.c.l.b16 %v921
  %v938 = vunpack.c.l.b16 %v922
  %v939 = vunpack.c.l.b16 %v923
  %v940 = vunpack.c.l.b16 %v924
  %v941 = vunpack.c.l.b16 %v925
  %v942 = vunpack.c.l.b16 %v926
  %v943 = vpack.c.b16 %v936, %v935
  %v944 = vpack.c.b16 %v938, %v937
  %v945 = vpack.c.b16 %v940, %v939
  %v946 = vpack.c.b16 %v942, %v941
  %v952 = vsel %vm102, %v917, 0
  %v955 = vsel %vm102, %v918, 0
  %957 = vmatprep.subr.bf16.mxu0 0
  %958 = vmatpush1.bf16.msra.mxu0 0
  %959 = vmatprep.subr.bf16.mxu0 0
  %960 = vmatpush1.bf16.msra.mxu0 0
  %961 = vmatprep.subr.bf16.mxu0 0
  %962 = vmatpush1.bf16.msra.mxu0 0
  %963 = vmatprep.subr.bf16.mxu0 0
  %964 = vmatpush1.bf16.msra.mxu0 0
  %965 = vmatprep.subr.bf16.mxu0 0
  %966 = vmatpush1.bf16.msra.mxu0 %v946
  %967 = vmatprep.subr.bf16.mxu0 0
  %968 = vmatpush1.bf16.msra.mxu0 %v945
  %969 = vmatprep.subr.bf16.mxu0 0
  %970 = vmatpush1.bf16.msra.mxu0 %v944
  %971 = vmatprep.subr.bf16.mxu0 0
  %972 = vmatpush1.bf16.msra.mxu0 %v943
  %973 = vmatprep.subr.bf16.mxu0 0
  %974 = vmatpush2.bf16.msra.mxu0 0
  %975 = vmatprep.subr.bf16.mxu0 0
  %976 = vmatpush2.bf16.msra.mxu0 0
  %977 = vmatprep.subr.bf16.mxu0 0
  %978 = vmatpush2.bf16.msra.mxu0 0
  %979 = vmatprep.subr.bf16.mxu0 0
  %980 = vmatpush2.bf16.msra.mxu0 0
  %981 = vmatprep.subr.bf16.mxu0 0
  %982 = vmatpush2.bf16.msra.mxu0 0
  %983 = vmatprep.subr.bf16.mxu0 0
  %984 = vmatpush2.bf16.msra.mxu0 0
  %985 = vmatprep.subr.bf16.mxu0 0
  %986 = vmatpush2.bf16.msra.mxu0 0
  %987 = vmatprep.subr.bf16.mxu0 0
  %988 = vmatpush2.bf16.msra.mxu0 0
  %989 = vmatprep.mubr.bf16.mxu0 0
  %990 = vmatmul.mubr.bf16.gmra.mxu0 %v952
  %v991 = vpop.f32.mrf.mxu0
  %v992 = vadd.f32 0.0, %v991
  %v993 = vpop.f32.mrf.mxu0
  %v994 = vpop.f32.mrf.mxu0
  %v995 = vadd.f32 0.0, %v994
  %v996 = vpop.f32.mrf.mxu0
  %997 = vmatprep.mubr.bf16.mxu0 0
  %998 = vmatmul.mubr.bf16.gmra.mxu0 %v955
  %v999 = vpop.f32.mrf.mxu0
  %v1000 = vadd.f32 0.0, %v999
  %v1001 = vpop.f32.mrf.mxu0
  %v1002 = vpop.f32.mrf.mxu0
  %v1003 = vadd.f32 0.0, %v1002
  %v1004 = vpop.f32.mrf.mxu0
  %1005 = vdwg.mxu0
  %v1054 = vunpack.c.l.b16 %v869
  %v1055 = vunpack.c.l.b16 %v870
  %v1056 = vunpack.c.l.b16 %v871
  %v1057 = vunpack.c.l.b16 %v872
  %v1058 = vunpack.c.l.b16 %v873
  %v1059 = vunpack.c.l.b16 %v874
  %v1060 = vunpack.c.l.b16 %v875
  %v1061 = vunpack.c.l.b16 %v876
  %v1062 = vunpack.c.l.b16 %v877
  %v1063 = vunpack.c.l.b16 %v878
  %v1064 = vunpack.c.l.b16 %v879
  %v1065 = vunpack.c.l.b16 %v880
  %v1066 = vunpack.c.l.b16 %v881
  %v1067 = vunpack.c.l.b16 %v882
  %v1068 = vunpack.c.l.b16 %v883
  %v1069 = vunpack.c.l.b16 %v884
  %v1070 = vunpack.c.l.b16 %v885
  %v1071 = vunpack.c.l.b16 %v886
  %v1072 = vunpack.c.l.b16 %v887
  %v1073 = vunpack.c.l.b16 %v888
  %v1074 = vunpack.c.l.b16 %v889
  %v1075 = vunpack.c.l.b16 %v890
  %v1076 = vunpack.c.l.b16 %v891
  %v1077 = vunpack.c.l.b16 %v892
  %v1078 = vunpack.c.l.b16 %v893
  %v1079 = vunpack.c.l.b16 %v894
  %v1080 = vunpack.c.l.b16 %v895
  %v1081 = vunpack.c.l.b16 %v896
  %v1082 = vunpack.c.l.b16 %v897
  %v1083 = vunpack.c.l.b16 %v898
  %v1084 = vunpack.c.l.b16 %v899
  %v1085 = vunpack.c.l.b16 %v900
  %v1086 = vunpack.c.l.b16 %v901
  %v1087 = vunpack.c.l.b16 %v902
  %v1088 = vunpack.c.l.b16 %v903
  %v1089 = vunpack.c.l.b16 %v904
  %v1090 = vunpack.c.l.b16 %v905
  %v1091 = vunpack.c.l.b16 %v906
  %v1092 = vunpack.c.l.b16 %v907
  %v1093 = vunpack.c.l.b16 %v908
  %v1094 = vunpack.c.l.b16 %v909
  %v1095 = vunpack.c.l.b16 %v910
  %v1096 = vunpack.c.l.b16 %v911
  %v1097 = vunpack.c.l.b16 %v912
  %v1098 = vunpack.c.l.b16 %v913
  %v1099 = vunpack.c.l.b16 %v914
  %v1100 = vunpack.c.l.b16 %v915
  %v1101 = vunpack.c.l.b16 %v916
  %v1102 = vpack.c.b16 %v1055, %v1054
  %v1103 = vpack.c.b16 %v1057, %v1056
  %v1104 = vpack.c.b16 %v1059, %v1058
  %v1105 = vpack.c.b16 %v1061, %v1060
  %v1106 = vpack.c.b16 %v1063, %v1062
  %v1107 = vpack.c.b16 %v1065, %v1064
  %v1108 = vpack.c.b16 %v1067, %v1066
  %v1109 = vpack.c.b16 %v1069, %v1068
  %v1110 = vpack.c.b16 %v1071, %v1070
  %v1111 = vpack.c.b16 %v1073, %v1072
  %v1112 = vpack.c.b16 %v1075, %v1074
  %v1113 = vpack.c.b16 %v1077, %v1076
  %v1114 = vpack.c.b16 %v1079, %v1078
  %v1115 = vpack.c.b16 %v1081, %v1080
  %v1116 = vpack.c.b16 %v1083, %v1082
  %v1117 = vpack.c.b16 %v1085, %v1084
  %v1118 = vpack.c.b16 %v1087, %v1086
  %v1119 = vpack.c.b16 %v1089, %v1088
  %v1120 = vpack.c.b16 %v1091, %v1090
  %v1121 = vpack.c.b16 %v1093, %v1092
  %v1122 = vpack.c.b16 %v1095, %v1094
  %v1123 = vpack.c.b16 %v1097, %v1096
  %v1124 = vpack.c.b16 %v1099, %v1098
  %v1125 = vpack.c.b16 %v1101, %v1100
  %1150 = vmatprep.subr.bf16.mxu0 0
  %1151 = vmatpush1.bf16.msra.mxu0 %v1109
  %1152 = vmatprep.subr.bf16.mxu0 0
  %1153 = vmatpush1.bf16.msra.mxu0 %v1108
  %1154 = vmatprep.subr.bf16.mxu0 0
  %1155 = vmatpush1.bf16.msra.mxu0 %v1107
  %1156 = vmatprep.subr.bf16.mxu0 0
  %1157 = vmatpush1.bf16.msra.mxu0 %v1106
  %1158 = vmatprep.subr.bf16.mxu0 0
  %1159 = vmatpush1.bf16.msra.mxu0 %v1105
  %1160 = vmatprep.subr.bf16.mxu0 0
  %1161 = vmatpush1.bf16.msra.mxu0 %v1104
  %1162 = vmatprep.subr.bf16.mxu0 0
  %1163 = vmatpush1.bf16.msra.mxu0 %v1103
  %1164 = vmatprep.subr.bf16.mxu0 0
  %1165 = vmatpush1.bf16.msra.mxu0 %v1102
  %1166 = vmatprep.subr.bf16.mxu0 0
  %1167 = vmatpush2.bf16.msra.mxu0 %v1117
  %1168 = vmatprep.subr.bf16.mxu0 0
  %1169 = vmatpush2.bf16.msra.mxu0 %v1116
  %1170 = vmatprep.subr.bf16.mxu0 0
  %1171 = vmatpush2.bf16.msra.mxu0 %v1115
  %1172 = vmatprep.subr.bf16.mxu0 0
  %1173 = vmatpush2.bf16.msra.mxu0 %v1114
  %1174 = vmatprep.subr.bf16.mxu0 0
  %1175 = vmatpush2.bf16.msra.mxu0 %v1113
  %1176 = vmatprep.subr.bf16.mxu0 0
  %1177 = vmatpush2.bf16.msra.mxu0 %v1112
  %1178 = vmatprep.subr.bf16.mxu0 0
  %1179 = vmatpush2.bf16.msra.mxu0 %v1111
  %1180 = vmatprep.subr.bf16.mxu0 0
  %1181 = vmatpush2.bf16.msra.mxu0 %v1110
  %1182 = vmatprep.mubr.bf16.mxu0 %v864
  %1183 = vmatmul.mubr.bf16.gmra.mxu0 %v863
  %v1184 = vpop.f32.mrf.mxu0
  %v1185 = vadd.f32 %v992, %v1184
  %v1186 = vpop.f32.mrf.mxu0
  %v1187 = vpop.f32.mrf.mxu0
  %v1188 = vadd.f32 %v995, %v1187
  %v1189 = vpop.f32.mrf.mxu0
  %1190 = vmatprep.mubr.bf16.mxu0 %v867
  %1191 = vmatmul.mubr.bf16.gmra.mxu0 %v866
  %v1192 = vpop.f32.mrf.mxu0
  %v1193 = vadd.f32 %v1000, %v1192
  %v1194 = vpop.f32.mrf.mxu0
  %v1195 = vpop.f32.mrf.mxu0
  %v1196 = vadd.f32 %v1003, %v1195
  %v1197 = vpop.f32.mrf.mxu0
  %1198 = vdwg.mxu0
  %1199 = vmatprep.subr.bf16.mxu0 0
  %1200 = vmatpush1.bf16.msra.mxu0 %v1125
  %1201 = vmatprep.subr.bf16.mxu0 0
  %1202 = vmatpush1.bf16.msra.mxu0 %v1124
  %1203 = vmatprep.subr.bf16.mxu0 0
  %1204 = vmatpush1.bf16.msra.mxu0 %v1123
  %1205 = vmatprep.subr.bf16.mxu0 0
  %1206 = vmatpush1.bf16.msra.mxu0 %v1122
  %1207 = vmatprep.subr.bf16.mxu0 0
  %1208 = vmatpush1.bf16.msra.mxu0 %v1121
  %1209 = vmatprep.subr.bf16.mxu0 0
  %1210 = vmatpush1.bf16.msra.mxu0 %v1120
  %1211 = vmatprep.subr.bf16.mxu0 0
  %1212 = vmatpush1.bf16.msra.mxu0 %v1119
  %1213 = vmatprep.subr.bf16.mxu0 0
  %1214 = vmatpush1.bf16.msra.mxu0 %v1118
  %1215 = vmatprep.subr.bf16.mxu0 0
  %1216 = vmatpush2.bf16.msra.mxu0 0
  %1217 = vmatprep.subr.bf16.mxu0 0
  %1218 = vmatpush2.bf16.msra.mxu0 0
  %1219 = vmatprep.subr.bf16.mxu0 0
  %1220 = vmatpush2.bf16.msra.mxu0 0
  %1221 = vmatprep.subr.bf16.mxu0 0
  %1222 = vmatpush2.bf16.msra.mxu0 0
  %1223 = vmatprep.subr.bf16.mxu0 0
  %1224 = vmatpush2.bf16.msra.mxu0 0
  %1225 = vmatprep.subr.bf16.mxu0 0
  %1226 = vmatpush2.bf16.msra.mxu0 0
  %1227 = vmatprep.subr.bf16.mxu0 0
  %1228 = vmatpush2.bf16.msra.mxu0 0
  %1229 = vmatprep.subr.bf16.mxu0 0
  %1230 = vmatpush2.bf16.msra.mxu0 0
  %1231 = vmatprep.mubr.bf16.mxu0 0
  %1232 = vmatmul.mubr.bf16.gmra.mxu0 %v865
  %v1233 = vpop.f32.mrf.mxu0
  %v1234 = vadd.f32 %v1185, %v1233
  %v1235 = vpop.f32.mrf.mxu0
  %v1236 = vpop.f32.mrf.mxu0
  %v1237 = vadd.f32 %v1188, %v1236
  %v1238 = vpop.f32.mrf.mxu0
  %1239 = vmatprep.mubr.bf16.mxu0 0
  %1240 = vmatmul.mubr.bf16.gmra.mxu0 %v868
  %v1241 = vpop.f32.mrf.mxu0
  %v1242 = vadd.f32 %v1193, %v1241
  %v1243 = vpop.f32.mrf.mxu0
  %v1244 = vpop.f32.mrf.mxu0
  %v1245 = vadd.f32 %v1196, %v1244
  %v1246 = vpop.f32.mrf.mxu0
  %1247 = vdwg.mxu0
  %v1248 = vld [vmem:[%s6 + $0x4] sm:$0x1]
  %v1249 = vlaneseq
  %v1250 = vshrl.u32 %v1249, 7
  %v1251 = vsub.s32 0, %v1250
  %v1252 = vrot.slane %v1248, %v1251
  %v1253 = vadd.f32 %v1234, %v1252
  %v1254 = vadd.f32 %v1237, %v1252
  %v1255 = vadd.f32 %v1242, %v1252
  %v1256 = vadd.f32 %v1245, %v1252
  %1257 = vst [vmem:[%s7] sm:$0xff] %v1253
  %1258 = vst [vmem:[%s7 + $0x8] sm:$0xff] %v1254
  %1259 = vst [vmem:[%s7 + $0x10] sm:$0xff] %v1255
  %1260 = vst [vmem:[%s7 + $0x18] sm:$0xff] %v1256
  // Predicated region
  $region30: #{resblock_generator.1} parent=0 // pred_check
    _
  $region31: #{resblock_generator.1} parent=0 // pred_check_branch
    %1262 = sbr.rel (0) target = $region33
  $region32: #{resblock_generator.1} parent=0 // pred_region
    _
  $region33: #{resblock_generator.1} parent=0 // pred_fallthru
    _
  // Predicated region
  $region34: #{resblock_generator.1} parent=0 // pred_check
    _
  $region35: #{resblock_generator.1} parent=0 // pred_check_branch
    %1264 = sbr.rel (0) target = $region37
  $region36: #{resblock_generator.1} parent=0 // pred_region
    _
  $region37: #{resblock_generator.1} parent=0 // pred_fallthru
    _

</llo_original>
